<compile_context>
chip_gen: v5e
topology: v5e:2x2
jax: 0.10.0
libtpu: 0.0.40
codegen_flags: <defaults>
</compile_context>

<pallas_src>
import jax
import jax.numpy as jnp
from jax.experimental import pallas as pl
from jax.experimental.pallas import tpu as pltpu

IN_FEATURES = 10
OUT_FEATURES = 5


def _round_up(x, m):
    return ((x + m - 1) // m) * m


def linear_sub2_kernel(xt_ref, w_ref, b_ref, ot_ref):
    # out^T = W @ x^T + (bias - 2); the '-2' is pre-folded into b_ref.
    # Lane-dense layout: batch is on the 128-lane axis of xt/ot, so every
    # load/store is an unmasked full-lane op (no vst.msk on 5/128 lanes).
    y = jnp.dot(
        w_ref[...], xt_ref[...],
        preferred_element_type=jnp.float32,
        precision=jax.lax.Precision.HIGHEST,  # exact f32 vs the torch reference
    )
    ot_ref[...] = (y + b_ref[...]).astype(ot_ref.dtype)


def prepare_params(weight, bias):
    """One-time parameter prep, hoisted out of the per-call path.

    weight: [OUT, IN] (PyTorch nn.Linear convention) -- kept as-is, since
            out^T = W @ x^T needs no transpose.
    bias:   [OUT] -> [OUT, 1] column with the forward's '-2' folded in.
    """
    w = jnp.asarray(weight, jnp.float32)
    b_col = jnp.asarray(bias, jnp.float32).reshape(-1, 1) - 2.0
    return w, b_col


def _choose_tm(batch, tm_max=8192):
    """Batch-tile size along the lane axis.

    * batch <= 128: single full-extent block (satisfies the (8,128) rule via
      the 'equals full array dim' escape hatch).
    * otherwise: a multiple of 128, capped at tm_max, and capped so the grid
      has >= ~4 steps when possible (keeps both v7x TensorCores busy under
      dimension_semantics=("parallel",) and amortizes ~0.35us/step overhead).
    """
    if batch <= 128:
        return batch
    tm = min(tm_max, _round_up(pl.cdiv(batch, 4), 128))
    return max(128, min(tm, _round_up(batch, 128)))


def linear_sub2(x, w, b_col, *, tm=None):
    """x: [B, IN] f32; w: [OUT, IN] f32; b_col: [OUT, 1] f32 (= bias - 2)."""
    B, IN = x.shape
    OUT = w.shape[0]
    assert w.shape == (OUT, IN) and b_col.shape == (OUT, 1)

    tm = _choose_tm(B) if tm is None else min(tm, B)
    grid = (pl.cdiv(B, tm),)

    # Layout plumbing (one-time transpose): lane-dense view so the batch
    # dimension maps to the 128-lane axis inside the kernel.
    xt = x.T  # [IN, B]

    out_t = pl.pallas_call(
        linear_sub2_kernel,
        out_shape=jax.ShapeDtypeStruct((OUT, B), x.dtype),
        grid=grid,
        in_specs=[
            pl.BlockSpec((IN, tm), lambda i: (0, i)),    # stream x^T batch tiles
            pl.BlockSpec((OUT, IN), lambda i: (0, 0)),   # VMEM-resident weight
            pl.BlockSpec((OUT, 1), lambda i: (0, 0)),    # VMEM-resident (bias-2)
        ],
        out_specs=pl.BlockSpec((OUT, tm), lambda i: (0, i)),
        compiler_params=pltpu.CompilerParams(
            dimension_semantics=("parallel",),           # shard batch tiles across TCs
        ),
    )(xt, w, b_col)

    return out_t.T  # back to [B, OUT]


def model_forward(x, weight, bias, *, min_pallas_batch=1024):
    """Full Model.forward. Tiny batches go straight to XLA (a single fused op
    beats kernel-launch + DMA setup overhead there); larger batches use the
    lane-dense Pallas kernel."""
    w, b_col = prepare_params(weight, bias)
    if x.shape[0] < min_pallas_batch:
        return x @ w.T + b_col[:, 0]
    return linear_sub2(x, w, b_col)


if __name__ == "__main__":
    key = jax.random.PRNGKey(0)
    kx, kw, kb, kx2 = jax.random.split(key, 4)

    B, IN, OUT = 8, IN_FEATURES, OUT_FEATURES
    x = jax.random.normal(kx, (B, IN), dtype=jnp.float32)
    # Deterministic init mimicking nn.Linear's uniform(-1/sqrt(IN), 1/sqrt(IN))
    bound = 1.0 / (IN ** 0.5)
    weight = jax.random.uniform(kw, (OUT, IN), minval=-bound, maxval=bound,
                                dtype=jnp.float32)
    bias = jax.random.uniform(kb, (OUT,), minval=-bound, maxval=bound,
                              dtype=jnp.float32)

    # One-time parameter prep (outside the per-call path).
    w, b_col = prepare_params(weight, bias)

    # Exercise the Pallas kernel at the small test shape (single grid step).
    out = linear_sub2(x, w, b_col)
    jax.block_until_ready(out)
    ref = x @ weight.T + bias - 2.0
    assert out.shape == (B, OUT)
    assert jnp.allclose(out, ref, atol=1e-5, rtol=1e-5), "mismatch vs reference"

    # Also exercise the tiled / multi-grid-step path (tm=128, 4 grid steps).
    B2 = 512
    x2 = jax.random.normal(kx2, (B2, IN), dtype=jnp.float32)
    out2 = linear_sub2(x2, w, b_col)
    jax.block_until_ready(out2)
    ref2 = x2 @ weight.T + bias - 2.0
    assert out2.shape == (B2, OUT)
    assert jnp.allclose(out2, ref2, atol=1e-5, rtol=1e-5), "mismatch (tiled path)"

    print("KERNEL_OK")
</pallas_src>

<mosaic_0001>
module attributes {stable_mosaic.version = 11 : i64} {
  func.func @linear_sub2_kernel(%arg0: i32, %arg1: memref<10x8xf32, #tpu.memory_space<vmem>>, %arg2: memref<5x10xf32, #tpu.memory_space<vmem>>, %arg3: memref<5x1xf32, #tpu.memory_space<vmem>>, %arg4: memref<5x8xf32, #tpu.memory_space<vmem>>) attributes {dimension_semantics = [#tpu.dimension_semantics<parallel>], iteration_bounds = array<i64: 1>, scalar_prefetch = 0 : i64, scratch_operands = 0 : i64, tpu.core_type = #tpu.core_type<tc>, window_params = [{transform_indices = @transform_0, window_bounds = array<i64: 10, 8>}, {pipeline_mode = #tpu.pipeline_mode<synchronous>, transform_indices = @transform_1, window_bounds = array<i64: 5, 10>}, {pipeline_mode = #tpu.pipeline_mode<synchronous>, transform_indices = @transform_2, window_bounds = array<i64: 5, 1>}, {transform_indices = @transform_3, window_bounds = array<i64: 5, 8>}]} {
    %c0 = arith.constant 0 : index
    %c0_0 = arith.constant 0 : index
    %0 = vector.load %arg2[%c0, %c0_0] : memref<5x10xf32, #tpu.memory_space<vmem>>, vector<5x10xf32>
    %c0_1 = arith.constant 0 : index
    %c0_2 = arith.constant 0 : index
    %1 = vector.load %arg1[%c0_1, %c0_2] : memref<10x8xf32, #tpu.memory_space<vmem>>, vector<10x8xf32>
    %cst = arith.constant dense<0.000000e+00> : vector<5x8xf32>
    %2 = tpu.matmul %0, %1, %cst {dimension_numbers = #tpu.dot_dimension_numbers<[1], [0], [0], [1], [0, 0, 1, 1], [], []>, precision = #tpu.contract_precision<fp32>} : vector<5x10xf32>, vector<10x8xf32>, vector<5x8xf32> -> vector<5x8xf32>
    %c0_3 = arith.constant 0 : index
    %c0_4 = arith.constant 0 : index
    %3 = vector.load %arg3[%c0_3, %c0_4] : memref<5x1xf32, #tpu.memory_space<vmem>>, vector<5x1xf32>
    %4 = vector.broadcast %3 : vector<5x1xf32> to vector<5x8xf32>
    %5 = arith.addf %2, %4 : vector<5x8xf32>
    %c0_5 = arith.constant 0 : index
    %c0_6 = arith.constant 0 : index
    %6 = vector.load %arg4[%c0_5, %c0_6] : memref<5x8xf32, #tpu.memory_space<vmem>>, vector<5x8xf32>
    tpu.vector_store %arg4[%c0_5, %c0_6], %5 {strides = array<i32>} : memref<5x8xf32, #tpu.memory_space<vmem>>, vector<5x8xf32>,
    return
  }
  func.func @transform_0(%arg0: i32) -> (i32, i32) {
    %c0_i32 = arith.constant 0 : i32
    %c0_i32_0 = arith.constant 0 : i32
    return %c0_i32, %arg0 : i32, i32
  }
  func.func @transform_1(%arg0: i32) -> (i32, i32) {
    %c0_i32 = arith.constant 0 : i32
    %c0_i32_0 = arith.constant 0 : i32
    %c0_i32_1 = arith.constant 0 : i32
    return %c0_i32, %c0_i32_0 : i32, i32
  }
  func.func @transform_2(%arg0: i32) -> (i32, i32) {
    %c0_i32 = arith.constant 0 : i32
    %c0_i32_0 = arith.constant 0 : i32
    %c0_i32_1 = arith.constant 0 : i32
    return %c0_i32, %c0_i32_0 : i32, i32
  }
  func.func @transform_3(%arg0: i32) -> (i32, i32) {
    %c0_i32 = arith.constant 0 : i32
    %c0_i32_0 = arith.constant 0 : i32
    return %c0_i32, %arg0 : i32, i32
  }
}

</mosaic_0001>

<llo_original>
// kernel: tpu_custom_call.1
$region0: #{tpu_custom_call.1}
  #allocation0 [shape = 'u32[]', space=smem, size = 0x4, offset = 0x4, fixed_abs, tag = 'smem constant byte address 0x4 - core index']
  #allocation1 [shape = 'u32[72,128]{1,0:T(1,128)}', space=vmem, size = 0x9000, scoped, tag = 'internal scratch']
  %s0 = inlined_call_operand.vmem [shape: f32[10,8], index: 0, kind: input, shape index: {}]
  %s1 = inlined_call_operand.vmem [shape: f32[5,10], index: 1, kind: input, shape index: {}]
  %s2 = inlined_call_operand.vmem [shape: f32[5,1], index: 2, kind: input, shape index: {}]
  %s3 = inlined_call_operand.hbm [shape: f32[5,8], index: 3, kind: output, shape index: {}]
  %s4 = sld [smem:[#allocation0]]
  $region22: #{tpu_custom_call.1} parent=0
    _
  %s6 = ssub.s32 1, %s4
  %s7 = scalar_select 0, %s6, %s4
  $region1: #{tpu_custom_call.1} parent=0
    #allocation2 [shape = 'u8[4096]{0}', space=vmem, size = 0x1000, scoped, tag = 'output window, operand 0, single buffered']
    #allocation3 [shape = 's32[1]{0}', space=sflag, size = 0x4, scoped, tag = 'scoped memory for tpu_custom_call.1']
    %8 = vsyncpa [#allocation3], 0
    // Predicated region
    $region2: #{tpu_custom_call.1} parent=1 // pred_check
      _
    $region3: #{tpu_custom_call.1} parent=1 // pred_check_branch
      %10 = sbr.rel (0) target = $region5
    $region4: #{tpu_custom_call.1} parent=1 // pred_region
      _
    $region5: #{tpu_custom_call.1} parent=1 // pred_fallthru
      _
    // Predicated region
    $region6: #{tpu_custom_call.1} parent=1 // pred_check
      _
    $region7: #{tpu_custom_call.1} parent=1 // pred_check_branch
      %12 = sbr.rel (0) target = $region9
    $region8: #{tpu_custom_call.1} parent=1 // pred_region
      _
    $region9: #{tpu_custom_call.1} parent=1 // pred_fallthru
      _
    // Predicated region
    $region10: #{tpu_custom_call.1} parent=1 // pred_check
      _
    $region11: #{tpu_custom_call.1} parent=1 // pred_check_branch
      %14 = sbr.rel (0) target = $region13
    $region12: #{tpu_custom_call.1} parent=1 // pred_region
      _
    $region13: #{tpu_custom_call.1} parent=1 // pred_fallthru
      _
    %v15 = vld [vmem:[%s1] sm:$0x1f]
    %v16 = vld [vmem:[%s0] sm:$0xff]
    %v17 = vld [vmem:[%s0 + $0x8] sm:$0x3]
    %v18 = vld [vmem:[%s2] sm:$0x1f]
    %20 = vset.pattern.permute.xlu0 0
    %21 = vperm.xlu0 %20, %v18
    %v22 = vpop.permute.xlu0 %21
    %vm24 = vcmask 80896
    %v26 = vsel %vm24, %v15, 0
    %vm28 = vcmask 1041408
    %v30 = vsel %vm28, %v17, 0
    %32 = vmatpush.msra.mxu0 0.0
    %33 = vmatpush.msra.mxu0 0.0
    %34 = vmatpush.msra.mxu0 0.0
    %35 = vmatpush.msra.mxu0 0.0
    %36 = vmatpush.msra.mxu0 0.0
    %37 = vmatpush.msra.mxu0 0.0
    %38 = vmatpush.msra.mxu0 0.0
    %39 = vmatpush.msra.mxu0 0.0
    %40 = vmatpush.msra.mxu0 0.0
    %41 = vmatpush.msra.mxu0 0.0
    %42 = vmatpush.msra.mxu0 0.0
    %43 = vmatpush.msra.mxu0 0.0
    %44 = vmatpush.msra.mxu0 0.0
    %45 = vmatpush.msra.mxu0 0.0
    %v46 = vand.u32 %v30, 4294901760
    %47 = vmatpush.msra.mxu0 %v46
    %v48 = vand.u32 %v16, 4294901760
    %49 = vmatpush.msra.mxu0 %v48
    %v50 = vand.u32 %v26, 4294901760
    %v51 = vsub.f32 %v26, %v50
    %v52 = vand.u32 %v51, 4294901760
    %v53 = vsub.f32 %v51, %v52
    %v54 = vand.u32 %v53, 4294901760
    %55 = vmatmul.f32.gmra.mxu0 %v54
    %v56 = vpop.f32.mrf.mxu0
    %v57 = vadd.f32 %v22, %v56
    %58 = vdwg.mxu0
    %59 = vmatpush.msra.mxu0 0.0
    %60 = vmatpush.msra.mxu0 0.0
    %61 = vmatpush.msra.mxu0 0.0
    %62 = vmatpush.msra.mxu0 0.0
    %63 = vmatpush.msra.mxu0 0.0
    %64 = vmatpush.msra.mxu0 0.0
    %65 = vmatpush.msra.mxu0 0.0
    %66 = vmatpush.msra.mxu0 0.0
    %67 = vmatpush.msra.mxu0 0.0
    %68 = vmatpush.msra.mxu0 0.0
    %69 = vmatpush.msra.mxu0 0.0
    %70 = vmatpush.msra.mxu0 0.0
    %71 = vmatpush.msra.mxu0 0.0
    %72 = vmatpush.msra.mxu0 0.0
    %v73 = vand.u32 %v30, 4294901760
    %v74 = vsub.f32 %v30, %v73
    %v75 = vand.u32 %v74, 4294901760
    %v76 = vsub.f32 %v74, %v75
    %v77 = vand.u32 %v76, 4294901760
    %78 = vmatpush.msra.mxu0 %v77
    %v79 = vand.u32 %v16, 4294901760
    %v80 = vsub.f32 %v16, %v79
    %v81 = vand.u32 %v80, 4294901760
    %v82 = vsub.f32 %v80, %v81
    %v83 = vand.u32 %v82, 4294901760
    %84 = vmatpush.msra.mxu0 %v83
    %v85 = vand.u32 %v26, 4294901760
    %86 = vmatmul.f32.gmra.mxu0 %v85
    %v87 = vpop.f32.mrf.mxu0
    %v88 = vadd.f32 %v57, %v87
    %89 = vdwg.mxu0
    %90 = vmatpush.msra.mxu0 0.0
    %91 = vmatpush.msra.mxu0 0.0
    %92 = vmatpush.msra.mxu0 0.0
    %93 = vmatpush.msra.mxu0 0.0
    %94 = vmatpush.msra.mxu0 0.0
    %95 = vmatpush.msra.mxu0 0.0
    %96 = vmatpush.msra.mxu0 0.0
    %97 = vmatpush.msra.mxu0 0.0
    %98 = vmatpush.msra.mxu0 0.0
    %99 = vmatpush.msra.mxu0 0.0
    %100 = vmatpush.msra.mxu0 0.0
    %101 = vmatpush.msra.mxu0 0.0
    %102 = vmatpush.msra.mxu0 0.0
    %103 = vmatpush.msra.mxu0 0.0
    %v104 = vand.u32 %v30, 4294901760
    %v105 = vsub.f32 %v30, %v104
    %106 = vmatpush.msra.mxu0 %v105
    %v107 = vand.u32 %v16, 4294901760
    %v108 = vsub.f32 %v16, %v107
    %109 = vmatpush.msra.mxu0 %v108
    %v110 = vand.u32 %v26, 4294901760
    %v111 = vsub.f32 %v26, %v110
    %112 = vmatmul.f32.gmra.mxu0 %v111
    %v113 = vpop.f32.mrf.mxu0
    %v114 = vadd.f32 %v88, %v113
    %115 = vdwg.mxu0
    %116 = vmatpush.msra.mxu0 0.0
    %117 = vmatpush.msra.mxu0 0.0
    %118 = vmatpush.msra.mxu0 0.0
    %119 = vmatpush.msra.mxu0 0.0
    %120 = vmatpush.msra.mxu0 0.0
    %121 = vmatpush.msra.mxu0 0.0
    %122 = vmatpush.msra.mxu0 0.0
    %123 = vmatpush.msra.mxu0 0.0
    %124 = vmatpush.msra.mxu0 0.0
    %125 = vmatpush.msra.mxu0 0.0
    %126 = vmatpush.msra.mxu0 0.0
    %127 = vmatpush.msra.mxu0 0.0
    %128 = vmatpush.msra.mxu0 0.0
    %129 = vmatpush.msra.mxu0 0.0
    %v130 = vand.u32 %v30, 4294901760
    %131 = vmatpush.msra.mxu0 %v130
    %v132 = vand.u32 %v16, 4294901760
    %133 = vmatpush.msra.mxu0 %v132
    %v134 = vand.u32 %v26, 4294901760
    %v135 = vsub.f32 %v26, %v134
    %v136 = vand.u32 %v135, 4294901760
    %137 = vmatmul.f32.gmra.mxu0 %v136
    %v138 = vpop.f32.mrf.mxu0
    %v139 = vadd.f32 %v114, %v138
    %140 = vdwg.mxu0
    %141 = vmatpush.msra.mxu0 0.0
    %142 = vmatpush.msra.mxu0 0.0
    %143 = vmatpush.msra.mxu0 0.0
    %144 = vmatpush.msra.mxu0 0.0
    %145 = vmatpush.msra.mxu0 0.0
    %146 = vmatpush.msra.mxu0 0.0
    %147 = vmatpush.msra.mxu0 0.0
    %148 = vmatpush.msra.mxu0 0.0
    %149 = vmatpush.msra.mxu0 0.0
    %150 = vmatpush.msra.mxu0 0.0
    %151 = vmatpush.msra.mxu0 0.0
    %152 = vmatpush.msra.mxu0 0.0
    %153 = vmatpush.msra.mxu0 0.0
    %154 = vmatpush.msra.mxu0 0.0
    %v155 = vand.u32 %v30, 4294901760
    %v156 = vsub.f32 %v30, %v155
    %v157 = vand.u32 %v156, 4294901760
    %158 = vmatpush.msra.mxu0 %v157
    %v159 = vand.u32 %v16, 4294901760
    %v160 = vsub.f32 %v16, %v159
    %v161 = vand.u32 %v160, 4294901760
    %162 = vmatpush.msra.mxu0 %v161
    %v163 = vand.u32 %v26, 4294901760
    %164 = vmatmul.f32.gmra.mxu0 %v163
    %v165 = vpop.f32.mrf.mxu0
    %v166 = vadd.f32 %v139, %v165
    %167 = vdwg.mxu0
    %168 = vmatpush.msra.mxu0 0.0
    %169 = vmatpush.msra.mxu0 0.0
    %170 = vmatpush.msra.mxu0 0.0
    %171 = vmatpush.msra.mxu0 0.0
    %172 = vmatpush.msra.mxu0 0.0
    %173 = vmatpush.msra.mxu0 0.0
    %174 = vmatpush.msra.mxu0 0.0
    %175 = vmatpush.msra.mxu0 0.0
    %176 = vmatpush.msra.mxu0 0.0
    %177 = vmatpush.msra.mxu0 0.0
    %178 = vmatpush.msra.mxu0 0.0
    %179 = vmatpush.msra.mxu0 0.0
    %180 = vmatpush.msra.mxu0 0.0
    %181 = vmatpush.msra.mxu0 0.0
    %v182 = vand.u32 %v30, 4294901760
    %183 = vmatpush.msra.mxu0 %v182
    %v184 = vand.u32 %v16, 4294901760
    %185 = vmatpush.msra.mxu0 %v184
    %v186 = vand.u32 %v26, 4294901760
    %187 = vmatmul.f32.gmra.mxu0 %v186
    %v188 = vpop.f32.mrf.mxu0
    %v189 = vadd.f32 %v166, %v188
    %190 = vdwg.mxu0
    %vm191 = vcmask 61440
    %192 = vst.msk [vmem:[#allocation2] sm:$0x1f] %vm191, %v189
    // Predicated region
    $region14: #{tpu_custom_call.1} parent=1 // pred_check
      _
    $region15: #{tpu_custom_call.1} parent=1 // pred_check_branch
      %194 = sbr.rel (0) target = $region17
    $region16: #{tpu_custom_call.1} parent=1 // pred_region
      %196 = vsyncadd [#allocation3], 0
      %s198 = sshll.u32 [#allocation2], 4
      %s199 = int_to_ptr.vmem [resolvable:$true] %s198
      %s200 = sshll.u32 %s3, 4
      %s201 = int_to_ptr.hbm [resolvable:$true] %s200
      %203 = dma.vmem_to_hbm [thread:$0]  %s199, 128, %s201, [#allocation3]
    $region17: #{tpu_custom_call.1} parent=1 // pred_fallthru
      _
    // Predicated region
    $region18: #{tpu_custom_call.1} parent=1 // pred_check
      _
    $region19: #{tpu_custom_call.1} parent=1 // pred_check_branch
      %205 = sbr.rel (0) target = $region21
    $region20: #{tpu_custom_call.1} parent=1 // pred_region
      %207 = dma.done [#allocation3], 128
    $region21: #{tpu_custom_call.1} parent=1 // pred_fallthru
      _
    %208 = vsyncpa [#allocation3], 1

</llo_original>
